<compile_context>
chip_gen: v7x
topology: tpu7x:2x2x1
jax: 0.10.0
libtpu: 0.0.40
codegen_flags: <defaults>
</compile_context>

<pallas_src>
import numpy as np
import jax
import jax.numpy as jnp
from jax.experimental import pallas as pl
from jax.experimental.pallas import tpu as pltpu


HIDDEN = 32
HYPER_NUM_LAYERS = 2
USE_SPEAKER = False
USE_CUSTOM_HYPER = True


def _round_up(x, m):
    return (x + m - 1) // m * m


# ----------------------------------------------------------------------------
# Pallas kernel: ALL hypergraph-conv layers fused into one call.
#   per layer:  X' = X @ Theta_l + b_l ;  X = P @ X' + C
# Two MXU matmuls + two VPU adds per layer; static trip count -> fully
# unrolled; every operand lives in VMEM for the whole call (single HBM trip).
# ----------------------------------------------------------------------------
def fused_hyperconv_kernel(x_ref, thetas_ref, biases_ref, p_ref, c_ref, out_ref):
    num_layers = thetas_ref.shape[0]
    p = p_ref[...]
    c = c_ref[...]
    x = x_ref[...]
    for ll in range(num_layers):            # static Python loop (L is tiny)
        x1 = jnp.dot(x, thetas_ref[ll],
                     preferred_element_type=jnp.float32) + biases_ref[ll]
        x = jnp.dot(p, x1, preferred_element_type=jnp.float32) + c
    out_ref[...] = x.astype(out_ref.dtype)


def _fused_hyperconv_impl(x, thetas, biases, p, c):
    n_p, f = x.shape
    vmem = pl.BlockSpec(memory_space=pltpu.MemorySpace.VMEM)
    return pl.pallas_call(
        fused_hyperconv_kernel,
        out_shape=jax.ShapeDtypeStruct((n_p, f), jnp.float32),
        in_specs=[vmem, vmem, vmem, vmem, vmem],
        out_specs=vmem,
    )(x, thetas, biases, p, c)


fused_hyperconv = jax.jit(_fused_hyperconv_impl)


# ----------------------------------------------------------------------------
# Host-side graph construction (glue).
# ----------------------------------------------------------------------------
def create_hyper_index(text_len, use_speaker):
    # TODO(synk): original create_hyper_index source unavailable; deterministic
    # stand-in: per dialogue, one hyperedge over all its utterances (type 1)
    # and one hyperedge over its even-position utterances (type 0).
    del use_speaker
    node_idx, edge_idx, edge_type = [], [], []
    e = 0
    start = 0
    for L in text_len:
        nodes = list(range(start, start + int(L)))
        node_idx += nodes
        edge_idx += [e] * len(nodes)
        edge_type.append(1.0)
        e += 1
        ev = nodes[0::2]
        node_idx += ev
        edge_idx += [e] * len(ev)
        edge_type.append(0.0)
        e += 1
        start += int(L)
    hyperedge_index = np.asarray([node_idx, edge_idx], dtype=np.int32)
    hyperedge_type1 = np.asarray(edge_type, dtype=np.float32).reshape(-1, 1)
    return hyperedge_index, hyperedge_type1


# ----------------------------------------------------------------------------
# Model: parameters mirror the PyTorch __init__ (deterministic init).
# ----------------------------------------------------------------------------
class HyperGraphModelPallas:
    def __init__(self, key, hidden=HIDDEN, num_layers=HYPER_NUM_LAYERS):
        self.hidden = hidden
        self.num_layers = num_layers
        # nn.Parameter(torch.ones(...))
        self.hyperedge_weight = jnp.ones((1000,), jnp.float32)
        self.EW_weight = jnp.ones((5200,), jnp.float32)
        keys = jax.random.split(key, 2 + 2 * num_layers)
        # nn.Parameter(torch.rand(hidden))
        self.hyperedge_attr1 = jax.random.uniform(keys[0], (hidden,), jnp.float32)
        self.hyperedge_attr2 = jax.random.uniform(keys[1], (hidden,), jnp.float32)
        # per-layer hyperconv linear weights (hidden -> hidden), stacked once so
        # the fused kernel can index them per layer from a single VMEM operand.
        # TODO(synk): hyper1 custom-conv source unavailable; modeled as a
        # degree-normalized HypergraphConv with EW incidence gating.
        thetas, biases = [], []
        scale = 1.0 / np.sqrt(hidden)
        for ll in range(num_layers):
            wk = keys[2 + 2 * ll]
            bk = keys[3 + 2 * ll]
            thetas.append(jax.random.normal(wk, (hidden, hidden), jnp.float32) * scale)
            biases.append(jax.random.normal(bk, (hidden,), jnp.float32) * 0.01)
        self.thetas = jnp.stack(thetas)                 # (L, F, F)
        self.biases = jnp.stack(biases)[:, None, :]     # (L, 1, F)
        # cache of layer-invariant graph operands keyed by the text_len tuple
        self._graph_cache = {}

    def _graph_operands(self, text_len_tensor):
        key = tuple(int(v) for v in np.asarray(text_len_tensor).reshape(-1))
        hit = self._graph_cache.get(key)
        if hit is not None:
            return hit

        hyperedge_index, hyperedge_type1 = create_hyper_index(key, USE_SPEAKER)
        N = int(sum(key))
        M = int(hyperedge_index[1].max()) + 1
        K = hyperedge_index.shape[1]

        weight = self.hyperedge_weight[:M]              # per-hyperedge weight w_e
        EW_weight = self.EW_weight[:K]                  # per-incidence weight
        type1 = jnp.asarray(hyperedge_type1)            # (M, 1)
        edge_attr = (self.hyperedge_attr1[None, :] * type1
                     + self.hyperedge_attr2[None, :] * (1.0 - type1))  # (M, F)

        ni = hyperedge_index[0]
        ei = hyperedge_index[1]
        H_ind = jnp.zeros((N, M), jnp.float32).at[ni, ei].set(1.0)       # node<-edge
        H_ew = jnp.zeros((M, N), jnp.float32).at[ei, ni].set(EW_weight)  # edge<-node
        H_w = H_ind * weight[None, :]                                    # w_e folded

        B = H_ind.sum(axis=0)                           # hyperedge degrees (M,)
        D = H_w.sum(axis=1)                             # node degrees (N,)
        inv_B = jnp.where(B > 0, 1.0 / jnp.maximum(B, 1e-12), 0.0)[:, None]
        inv_D = jnp.where(D > 0, 1.0 / jnp.maximum(D, 1e-12), 0.0)[:, None]

        # Fold degree norms into the incidence operators, then collapse the
        # layer-invariant two-hop product and the edge-attr contribution.
        A_out = inv_D * H_w                             # (N, M) = D^{-1} H_w
        A_in = inv_B * H_ew                             # (M, N) = B^{-1} H_ew
        P = A_out @ A_in                                # (N, N)
        C = A_out @ edge_attr                           # (N, F)

        # Pad the node dim to a sublane multiple of 8 (feature dim stays at F).
        Np = _round_up(N, 8)
        if Np != N:
            P = jnp.pad(P, ((0, Np - N), (0, Np - N)))
            C = jnp.pad(C, ((0, Np - N), (0, 0)))

        result = (P, C, A_out, A_in, edge_attr, N, Np)
        self._graph_cache[key] = result
        return result

    def forward(self, node_concat_feat, text_len_tensor):
        P, C, _, _, _, N, Np = self._graph_operands(text_len_tensor)
        x = node_concat_feat.astype(jnp.float32)
        if Np != N:
            x = jnp.pad(x, ((0, Np - N), (0, 0)))
        out = fused_hyperconv(x, self.thetas, self.biases, P, C)
        return out[:N]

    def reference_forward(self, node_concat_feat, text_len_tensor):
        # Pure-JAX (un-collapsed) reference used to validate the fused kernel.
        _, _, A_out, A_in, edge_attr, N, _ = self._graph_operands(text_len_tensor)
        x = node_concat_feat.astype(jnp.float32)
        c = A_out @ edge_attr
        for ll in range(self.num_layers):
            x1 = x @ self.thetas[ll] + self.biases[ll][0]
            x = A_out @ (A_in @ x1) + c
        return x[:N]


if __name__ == "__main__":
    key = jax.random.PRNGKey(0)
    pkey, xkey = jax.random.split(key)

    model = HyperGraphModelPallas(pkey, hidden=HIDDEN,
                                  num_layers=HYPER_NUM_LAYERS)

    # batch of 3 dialogues with lengths 5, 7, 4 -> N = 16 utterance nodes
    text_len_tensor = np.asarray([5, 7, 4], dtype=np.int32)
    N = int(text_len_tensor.sum())
    node_feat = jax.random.normal(xkey, (N, HIDDEN), jnp.float32)

    out = model.forward(node_feat, text_len_tensor)
    out = jax.block_until_ready(out)
    assert out.shape == (N, HIDDEN)
    assert bool(jnp.all(jnp.isfinite(out)))

    # Correctness: fused Pallas kernel vs. pure-JAX un-collapsed reference.
    ref = jax.block_until_ready(model.reference_forward(node_feat, text_len_tensor))
    np.testing.assert_allclose(np.asarray(out), np.asarray(ref),
                               rtol=1e-4, atol=1e-4)
    print("KERNEL_OK")
</pallas_src>

<mosaic_0001>
module attributes {stable_mosaic.version = 11 : i64} {
  func.func @fused_hyperconv_kernel(%arg0: memref<16x32xf32, #tpu.memory_space<vmem>>, %arg1: memref<2x32x32xf32, #tpu.memory_space<vmem>>, %arg2: memref<2x1x32xf32, #tpu.memory_space<vmem>>, %arg3: memref<16x16xf32, #tpu.memory_space<vmem>>, %arg4: memref<16x32xf32, #tpu.memory_space<vmem>>, %arg5: memref<16x32xf32, #tpu.memory_space<vmem>>) attributes {dimension_semantics = [], scalar_prefetch = 0 : i64, scratch_operands = 0 : i64, tpu.core_type = #tpu.core_type<tc>} {
    %c0 = arith.constant 0 : index
    %c0_0 = arith.constant 0 : index
    %0 = vector.load %arg3[%c0, %c0_0] : memref<16x16xf32, #tpu.memory_space<vmem>>, vector<16x16xf32>
    %c0_1 = arith.constant 0 : index
    %c0_2 = arith.constant 0 : index
    %1 = vector.load %arg4[%c0_1, %c0_2] : memref<16x32xf32, #tpu.memory_space<vmem>>, vector<16x32xf32>
    %c0_3 = arith.constant 0 : index
    %c0_4 = arith.constant 0 : index
    %2 = vector.load %arg0[%c0_3, %c0_4] : memref<16x32xf32, #tpu.memory_space<vmem>>, vector<16x32xf32>
    %c0_5 = arith.constant 0 : index
    %c0_6 = arith.constant 0 : index
    %c0_7 = arith.constant 0 : index
    %3 = vector.load %arg1[%c0_5, %c0_6, %c0_7] : memref<2x32x32xf32, #tpu.memory_space<vmem>>, vector<1x32x32xf32>
    %4 = vector.shape_cast %3 : vector<1x32x32xf32> to vector<32x32xf32>
    %cst = arith.constant dense<0.000000e+00> : vector<16x32xf32>
    %5 = tpu.matmul %2, %4, %cst {dimension_numbers = #tpu.dot_dimension_numbers<[1], [0], [0], [1], [0, 0, 1, 1], [], []>} : vector<16x32xf32>, vector<32x32xf32>, vector<16x32xf32> -> vector<16x32xf32>
    %c0_8 = arith.constant 0 : index
    %c0_9 = arith.constant 0 : index
    %c0_10 = arith.constant 0 : index
    %6 = vector.load %arg2[%c0_8, %c0_9, %c0_10] : memref<2x1x32xf32, #tpu.memory_space<vmem>>, vector<1x1x32xf32>
    %7 = vector.shape_cast %6 : vector<1x1x32xf32> to vector<1x32xf32>
    %8 = vector.broadcast %7 : vector<1x32xf32> to vector<16x32xf32>
    %9 = arith.addf %5, %8 : vector<16x32xf32>
    %cst_11 = arith.constant dense<0.000000e+00> : vector<16x32xf32>
    %10 = tpu.matmul %0, %9, %cst_11 {dimension_numbers = #tpu.dot_dimension_numbers<[1], [0], [0], [1], [0, 0, 1, 1], [], []>} : vector<16x16xf32>, vector<16x32xf32>, vector<16x32xf32> -> vector<16x32xf32>
    %11 = arith.addf %10, %1 : vector<16x32xf32>
    %c1 = arith.constant 1 : index
    %c0_12 = arith.constant 0 : index
    %c0_13 = arith.constant 0 : index
    %12 = vector.load %arg1[%c1, %c0_12, %c0_13] : memref<2x32x32xf32, #tpu.memory_space<vmem>>, vector<1x32x32xf32>
    %13 = vector.shape_cast %12 : vector<1x32x32xf32> to vector<32x32xf32>
    %cst_14 = arith.constant dense<0.000000e+00> : vector<16x32xf32>
    %14 = tpu.matmul %11, %13, %cst_14 {dimension_numbers = #tpu.dot_dimension_numbers<[1], [0], [0], [1], [0, 0, 1, 1], [], []>} : vector<16x32xf32>, vector<32x32xf32>, vector<16x32xf32> -> vector<16x32xf32>
    %c1_15 = arith.constant 1 : index
    %c0_16 = arith.constant 0 : index
    %c0_17 = arith.constant 0 : index
    %15 = vector.load %arg2[%c1_15, %c0_16, %c0_17] : memref<2x1x32xf32, #tpu.memory_space<vmem>>, vector<1x1x32xf32>
    %16 = vector.shape_cast %15 : vector<1x1x32xf32> to vector<1x32xf32>
    %17 = vector.broadcast %16 : vector<1x32xf32> to vector<16x32xf32>
    %18 = arith.addf %14, %17 : vector<16x32xf32>
    %cst_18 = arith.constant dense<0.000000e+00> : vector<16x32xf32>
    %19 = tpu.matmul %0, %18, %cst_18 {dimension_numbers = #tpu.dot_dimension_numbers<[1], [0], [0], [1], [0, 0, 1, 1], [], []>} : vector<16x16xf32>, vector<16x32xf32>, vector<16x32xf32> -> vector<16x32xf32>
    %20 = arith.addf %19, %1 : vector<16x32xf32>
    %c0_19 = arith.constant 0 : index
    %c0_20 = arith.constant 0 : index
    %21 = vector.load %arg5[%c0_19, %c0_20] : memref<16x32xf32, #tpu.memory_space<vmem>>, vector<16x32xf32>
    tpu.vector_store %arg5[%c0_19, %c0_20], %20 {strides = array<i32>} : memref<16x32xf32, #tpu.memory_space<vmem>>, vector<16x32xf32>,
    return
  }
}

</mosaic_0001>

<llo_original>
// kernel: _fused_hyperconv_impl.1
$region0: #{_fused_hyperconv_impl.1}
  #allocation0 [shape = 'u32[]', space=smem, size = 0x4, offset = 0x4, fixed_abs, tag = 'smem constant byte address 0x4 - core index']
  #allocation1 [shape = 'u32[144,128]{1,0:T(1,128)}', space=vmem, size = 0x12000, scoped, tag = 'internal scratch']
  %s0 = inlined_call_operand.hbm [shape: f32[16,32], index: 0, kind: input, shape index: {}]
  %s1 = inlined_call_operand.hbm [shape: f32[2,32,32], index: 1, kind: input, shape index: {}]
  %s2 = inlined_call_operand.vmem [shape: f32[2,1,32], index: 2, kind: input, shape index: {}]
  %s3 = inlined_call_operand.hbm [shape: f32[16,16], index: 3, kind: input, shape index: {}]
  %s4 = inlined_call_operand.hbm [shape: f32[16,32], index: 4, kind: input, shape index: {}]
  %s5 = inlined_call_operand.hbm [shape: f32[16,32], index: 5, kind: output, shape index: {}]
  %s6 = sld [smem:[#allocation0]]
  $region46: #{_fused_hyperconv_impl.1} parent=0
    _
  %s8 = ssub.s32 1, %s6
  %s9 = scalar_select 0, %s8, %s6
  $region1: #{_fused_hyperconv_impl.1} parent=0
    #allocation2 [shape = 'u8[8192]{0}', space=vmem, size = 0x2000, scoped, tag = 'input window, operand 0, single buffered']
    #allocation3 [shape = 's32[1]{0}', space=sflag, size = 0x4, scoped, tag = 'scoped memory for _fused_hyperconv_impl.1']
    #allocation4 [shape = 's32[1]{0}', space=sflag, size = 0x4, scoped, tag = 'scoped memory for _fused_hyperconv_impl.1']
    #allocation5 [shape = 'u8[32768]{0}', space=vmem, size = 0x8000, scoped, tag = 'input window, operand 1, single buffered']
    #allocation6 [shape = 's32[1]{0}', space=sflag, size = 0x4, scoped, tag = 'scoped memory for _fused_hyperconv_impl.1']
    #allocation7 [shape = 'u8[8192]{0}', space=vmem, size = 0x2000, scoped, tag = 'input window, operand 3, single buffered']
    #allocation8 [shape = 'u8[8192]{0}', space=vmem, size = 0x2000, scoped, tag = 'input window, operand 4, single buffered']
    #allocation9 [shape = 's32[1]{0}', space=sflag, size = 0x4, scoped, tag = 'scoped memory for _fused_hyperconv_impl.1']
    #allocation10 [shape = 'u8[8192]{0}', space=vmem, size = 0x2000, scoped, tag = 'output window, operand 0, single buffered']
    %10 = vsyncpa [#allocation3], 0
    %11 = vsyncpa [#allocation6], 0
    %12 = vsyncpa [#allocation9], 0
    %13 = vsyncpa [#allocation4], 0
    // Predicated region
    $region2: #{_fused_hyperconv_impl.1} parent=1 // pred_check
      _
    $region3: #{_fused_hyperconv_impl.1} parent=1 // pred_check_branch
      %15 = sbr.rel (0) target = $region5
    $region4: #{_fused_hyperconv_impl.1} parent=1 // pred_region
      %s17 = ssub.s32 256, 256
      %18 = vsyncadd [#allocation3], %s17
      %s19 = sshll.u32 [#allocation2], 4
      %s20 = int_to_ptr.vmem [resolvable:$true] %s19
      %25 = dma.hbm_to_vmem [thread:$0]  %s0, 256, %s20, [#allocation3], 128, 128, 8
    $region5: #{_fused_hyperconv_impl.1} parent=1 // pred_fallthru
      _
    // Predicated region
    $region6: #{_fused_hyperconv_impl.1} parent=1 // pred_check
      _
    $region7: #{_fused_hyperconv_impl.1} parent=1 // pred_check_branch
      %27 = sbr.rel (0) target = $region9
    $region8: #{_fused_hyperconv_impl.1} parent=1 // pred_region
      %s29 = ssub.s32 1024, 1024
      %30 = vsyncadd [#allocation6], %s29
      %s31 = sshll.u32 [#allocation5], 4
      %s32 = int_to_ptr.vmem [resolvable:$true] %s31
      %37 = dma.hbm_to_vmem [thread:$0]  %s1, 1024, %s32, [#allocation6], 128, 128, 8
    $region9: #{_fused_hyperconv_impl.1} parent=1 // pred_fallthru
      _
    // Predicated region
    $region10: #{_fused_hyperconv_impl.1} parent=1 // pred_check
      _
    $region11: #{_fused_hyperconv_impl.1} parent=1 // pred_check_branch
      %39 = sbr.rel (0) target = $region13
    $region12: #{_fused_hyperconv_impl.1} parent=1 // pred_region
      _
    $region13: #{_fused_hyperconv_impl.1} parent=1 // pred_fallthru
      _
    // Predicated region
    $region14: #{_fused_hyperconv_impl.1} parent=1 // pred_check
      _
    $region15: #{_fused_hyperconv_impl.1} parent=1 // pred_check_branch
      %41 = sbr.rel (0) target = $region17
    $region16: #{_fused_hyperconv_impl.1} parent=1 // pred_region
      %s43 = ssub.s32 256, 256
      %44 = vsyncadd [#allocation6], %s43
      %s45 = sshll.u32 [#allocation7], 4
      %s46 = int_to_ptr.vmem [resolvable:$true] %s45
      %51 = dma.hbm_to_vmem [thread:$0]  %s3, 256, %s46, [#allocation6], 128, 128, 8
    $region17: #{_fused_hyperconv_impl.1} parent=1 // pred_fallthru
      _
    // Predicated region
    $region18: #{_fused_hyperconv_impl.1} parent=1 // pred_check
      _
    $region19: #{_fused_hyperconv_impl.1} parent=1 // pred_check_branch
      %53 = sbr.rel (0) target = $region21
    $region20: #{_fused_hyperconv_impl.1} parent=1 // pred_region
      %s55 = ssub.s32 256, 256
      %56 = vsyncadd [#allocation9], %s55
      %s57 = sshll.u32 [#allocation8], 4
      %s58 = int_to_ptr.vmem [resolvable:$true] %s57
      %63 = dma.hbm_to_vmem [thread:$0]  %s4, 256, %s58, [#allocation9], 128, 128, 8
    $region21: #{_fused_hyperconv_impl.1} parent=1 // pred_fallthru
      _
    // Predicated region
    $region22: #{_fused_hyperconv_impl.1} parent=1 // pred_check
      _
    $region23: #{_fused_hyperconv_impl.1} parent=1 // pred_check_branch
      %65 = sbr.rel (0) target = $region25
    $region24: #{_fused_hyperconv_impl.1} parent=1 // pred_region
      %66 = dma.done [#allocation3], 256
    $region25: #{_fused_hyperconv_impl.1} parent=1 // pred_fallthru
      _
    // Predicated region
    $region26: #{_fused_hyperconv_impl.1} parent=1 // pred_check
      _
    $region27: #{_fused_hyperconv_impl.1} parent=1 // pred_check_branch
      %68 = sbr.rel (0) target = $region29
    $region28: #{_fused_hyperconv_impl.1} parent=1 // pred_region
      %69 = dma.done [#allocation6], 1024
    $region29: #{_fused_hyperconv_impl.1} parent=1 // pred_fallthru
      _
    // Predicated region
    $region30: #{_fused_hyperconv_impl.1} parent=1 // pred_check
      _
    $region31: #{_fused_hyperconv_impl.1} parent=1 // pred_check_branch
      %71 = sbr.rel (0) target = $region33
    $region32: #{_fused_hyperconv_impl.1} parent=1 // pred_region
      %72 = dma.done [#allocation6], 256
    $region33: #{_fused_hyperconv_impl.1} parent=1 // pred_fallthru
      _
    // Predicated region
    $region34: #{_fused_hyperconv_impl.1} parent=1 // pred_check
      _
    $region35: #{_fused_hyperconv_impl.1} parent=1 // pred_check_branch
      %74 = sbr.rel (0) target = $region37
    $region36: #{_fused_hyperconv_impl.1} parent=1 // pred_region
      %75 = dma.done [#allocation9], 256
    $region37: #{_fused_hyperconv_impl.1} parent=1 // pred_fallthru
      _
    %v76 = vld [vmem:[#allocation7] sm:$0xff]
    %v77 = vld [vmem:[#allocation7 + $0x8] sm:$0xff]
    %v78 = vld [vmem:[#allocation8] sm:$0xff]
    %v79 = vld [vmem:[#allocation8 + $0x8] sm:$0xff]
    %v80 = vld [vmem:[#allocation2] sm:$0xff]
    %v81 = vld [vmem:[#allocation2 + $0x8] sm:$0xff]
    %v82 = vld [vmem:[#allocation5] sm:$0xff]
    %v83 = vld [vmem:[#allocation5 + $0x8] sm:$0xff]
    %v84 = vld [vmem:[#allocation5 + $0x10] sm:$0xff]
    %v85 = vld [vmem:[#allocation5 + $0x18] sm:$0xff]
    %v86 = vld [vmem:[%s2] sm:$0x1]
    %v88 = vlaneseq
    %v89 = vshrl.u32 %v88, 7
    %v90 = vsub.s32 0, %v89
    %v91 = vrot.slane %v86, %v90
    %vm93 = vcmask 261120
    %v95 = vsel %vm93, %v80, 0
    %v98 = vsel %vm93, %v81, 0
    %100 = vmatprep.subr.mxu0 0.0
    %101 = vmatpush1.msra.mxu0 %v82
    %102 = vmatprep.subr.mxu0 0.0
    %103 = vmatpush1.msra.mxu0 %v83
    %104 = vmatprep.subr.mxu0 0.0
    %105 = vmatpush1.msra.mxu0 %v84
    %106 = vmatprep.subr.mxu0 0.0
    %107 = vmatpush1.msra.mxu0 %v85
    %108 = vmatprep.subr.mxu0 0.0
    %109 = vmatpush1.msra.mxu0 0.0
    %110 = vmatprep.subr.mxu0 0.0
    %111 = vmatpush1.msra.mxu0 0.0
    %112 = vmatprep.subr.mxu0 0.0
    %113 = vmatpush1.msra.mxu0 0.0
    %114 = vmatprep.subr.mxu0 0.0
    %115 = vmatpush1.msra.mxu0 0.0
    %116 = vmatprep.subr.mxu0 0.0
    %117 = vmatpush1.msra.mxu0 0.0
    %118 = vmatprep.subr.mxu0 0.0
    %119 = vmatpush1.msra.mxu0 0.0
    %120 = vmatprep.subr.mxu0 0.0
    %121 = vmatpush1.msra.mxu0 0.0
    %122 = vmatprep.subr.mxu0 0.0
    %123 = vmatpush1.msra.mxu0 0.0
    %124 = vmatprep.subr.mxu0 0.0
    %125 = vmatpush1.msra.mxu0 0.0
    %126 = vmatprep.subr.mxu0 0.0
    %127 = vmatpush1.msra.mxu0 0.0
    %128 = vmatprep.subr.mxu0 0.0
    %129 = vmatpush1.msra.mxu0 0.0
    %130 = vmatprep.subr.mxu0 0.0
    %131 = vmatpush1.msra.mxu0 0.0
    %132 = vmatprep.subr.mxu0 0.0
    %133 = vmatpush1.msra.mxu0 0.0
    %134 = vmatprep.subr.mxu0 0.0
    %135 = vmatpush1.msra.mxu0 0.0
    %136 = vmatprep.subr.mxu0 0.0
    %137 = vmatpush1.msra.mxu0 0.0
    %138 = vmatprep.subr.mxu0 0.0
    %139 = vmatpush1.msra.mxu0 0.0
    %140 = vmatprep.subr.mxu0 0.0
    %141 = vmatpush1.msra.mxu0 0.0
    %142 = vmatprep.subr.mxu0 0.0
    %143 = vmatpush1.msra.mxu0 0.0
    %144 = vmatprep.subr.mxu0 0.0
    %145 = vmatpush1.msra.mxu0 0.0
    %146 = vmatprep.subr.mxu0 0.0
    %147 = vmatpush1.msra.mxu0 0.0
    %148 = vmatprep.subr.mxu0 0.0
    %149 = vmatpush1.msra.mxu0 0.0
    %150 = vmatprep.subr.mxu0 0.0
    %151 = vmatpush1.msra.mxu0 0.0
    %152 = vmatprep.subr.mxu0 0.0
    %153 = vmatpush1.msra.mxu0 0.0
    %154 = vmatprep.subr.mxu0 0.0
    %155 = vmatpush1.msra.mxu0 0.0
    %156 = vmatprep.subr.mxu0 0.0
    %157 = vmatpush1.msra.mxu0 0.0
    %158 = vmatprep.subr.mxu0 0.0
    %159 = vmatpush1.msra.mxu0 0.0
    %160 = vmatprep.subr.mxu0 0.0
    %161 = vmatpush1.msra.mxu0 0.0
    %162 = vmatprep.subr.mxu0 0.0
    %163 = vmatpush1.msra.mxu0 0.0
    %164 = vmatprep.mubr.f32.mxu0 0.0
    %165 = vmatmul.mubr.f32.gmra.mrb[0].mxu0 %v95
    %v166 = vpop.f32.mrb[0].mxu0
    %v167 = vadd.f32 %v91, %v166
    %v168 = vpop.f32.mrb[0].mxu0
    %169 = vmatprep.mubr.f32.mxu0 0.0
    %170 = vmatmul.mubr.f32.gmra.mrb[0].mxu0 %v98
    %v171 = vpop.f32.mrb[0].mxu0
    %v172 = vadd.f32 %v91, %v171
    %v173 = vpop.f32.mrb[0].mxu0
    %174 = vdwg.mxu0
    %vm175 = vcmask 130048
    %v177 = vsel %vm175, %v76, 0
    %v180 = vsel %vm175, %v77, 0
    %182 = vmatprep.subr.mxu0 0.0
    %183 = vmatpush1.msra.mxu0 %v167
    %184 = vmatprep.subr.mxu0 0.0
    %185 = vmatpush1.msra.mxu0 %v172
    %186 = vmatprep.subr.mxu0 0.0
    %187 = vmatpush1.msra.mxu0 0.0
    %188 = vmatprep.subr.mxu0 0.0
    %189 = vmatpush1.msra.mxu0 0.0
    %190 = vmatprep.subr.mxu0 0.0
    %191 = vmatpush1.msra.mxu0 0.0
    %192 = vmatprep.subr.mxu0 0.0
    %193 = vmatpush1.msra.mxu0 0.0
    %194 = vmatprep.subr.mxu0 0.0
    %195 = vmatpush1.msra.mxu0 0.0
    %196 = vmatprep.subr.mxu0 0.0
    %197 = vmatpush1.msra.mxu0 0.0
    %198 = vmatprep.subr.mxu0 0.0
    %199 = vmatpush1.msra.mxu0 0.0
    %200 = vmatprep.subr.mxu0 0.0
    %201 = vmatpush1.msra.mxu0 0.0
    %202 = vmatprep.subr.mxu0 0.0
    %203 = vmatpush1.msra.mxu0 0.0
    %204 = vmatprep.subr.mxu0 0.0
    %205 = vmatpush1.msra.mxu0 0.0
    %206 = vmatprep.subr.mxu0 0.0
    %207 = vmatpush1.msra.mxu0 0.0
    %208 = vmatprep.subr.mxu0 0.0
    %209 = vmatpush1.msra.mxu0 0.0
    %210 = vmatprep.subr.mxu0 0.0
    %211 = vmatpush1.msra.mxu0 0.0
    %212 = vmatprep.subr.mxu0 0.0
    %213 = vmatpush1.msra.mxu0 0.0
    %214 = vmatprep.subr.mxu0 0.0
    %215 = vmatpush1.msra.mxu0 0.0
    %216 = vmatprep.subr.mxu0 0.0
    %217 = vmatpush1.msra.mxu0 0.0
    %218 = vmatprep.subr.mxu0 0.0
    %219 = vmatpush1.msra.mxu0 0.0
    %220 = vmatprep.subr.mxu0 0.0
    %221 = vmatpush1.msra.mxu0 0.0
    %222 = vmatprep.subr.mxu0 0.0
    %223 = vmatpush1.msra.mxu0 0.0
    %224 = vmatprep.subr.mxu0 0.0
    %225 = vmatpush1.msra.mxu0 0.0
    %226 = vmatprep.subr.mxu0 0.0
    %227 = vmatpush1.msra.mxu0 0.0
    %228 = vmatprep.subr.mxu0 0.0
    %229 = vmatpush1.msra.mxu0 0.0
    %230 = vmatprep.subr.mxu0 0.0
    %231 = vmatpush1.msra.mxu0 0.0
    %232 = vmatprep.subr.mxu0 0.0
    %233 = vmatpush1.msra.mxu0 0.0
    %234 = vmatprep.subr.mxu0 0.0
    %235 = vmatpush1.msra.mxu0 0.0
    %236 = vmatprep.subr.mxu0 0.0
    %237 = vmatpush1.msra.mxu0 0.0
    %238 = vmatprep.subr.mxu0 0.0
    %239 = vmatpush1.msra.mxu0 0.0
    %240 = vmatprep.subr.mxu0 0.0
    %241 = vmatpush1.msra.mxu0 0.0
    %242 = vmatprep.subr.mxu0 0.0
    %243 = vmatpush1.msra.mxu0 0.0
    %244 = vmatprep.subr.mxu0 0.0
    %245 = vmatpush1.msra.mxu0 0.0
    %246 = vmatprep.mubr.f32.mxu0 0.0
    %247 = vmatmul.mubr.f32.gmra.mrb[0].mxu0 %v177
    %v248 = vpop.f32.mrb[0].mxu0
    %v249 = vadd.f32 %v78, %v248
    %v250 = vpop.f32.mrb[0].mxu0
    %251 = vmatprep.mubr.f32.mxu0 0.0
    %252 = vmatmul.mubr.f32.gmra.mrb[0].mxu0 %v180
    %v253 = vpop.f32.mrb[0].mxu0
    %v254 = vadd.f32 %v79, %v253
    %v255 = vpop.f32.mrb[0].mxu0
    %256 = vdwg.mxu0
    %s257 = scalar_lea.vmem [#allocation5], 32
    %v258 = vld [vmem:[%s257] sm:$0xff]
    %v259 = vld [vmem:[%s257 + $0x8] sm:$0xff]
    %v260 = vld [vmem:[%s257 + $0x10] sm:$0xff]
    %v261 = vld [vmem:[%s257 + $0x18] sm:$0xff]
    %s262 = scalar_lea.vmem %s2, 1
    %v263 = vld [vmem:[%s262] sm:$0x1]
    %v265 = vlaneseq
    %v266 = vshrl.u32 %v265, 7
    %v267 = vsub.s32 0, %v266
    %v268 = vrot.slane %v263, %v267
    %v271 = vsel %vm93, %v249, 0
    %v274 = vsel %vm93, %v254, 0
    %276 = vmatprep.subr.mxu0 0.0
    %277 = vmatpush1.msra.mxu0 %v258
    %278 = vmatprep.subr.mxu0 0.0
    %279 = vmatpush1.msra.mxu0 %v259
    %280 = vmatprep.subr.mxu0 0.0
    %281 = vmatpush1.msra.mxu0 %v260
    %282 = vmatprep.subr.mxu0 0.0
    %283 = vmatpush1.msra.mxu0 %v261
    %284 = vmatprep.subr.mxu0 0.0
    %285 = vmatpush1.msra.mxu0 0.0
    %286 = vmatprep.subr.mxu0 0.0
    %287 = vmatpush1.msra.mxu0 0.0
    %288 = vmatprep.subr.mxu0 0.0
    %289 = vmatpush1.msra.mxu0 0.0
    %290 = vmatprep.subr.mxu0 0.0
    %291 = vmatpush1.msra.mxu0 0.0
    %292 = vmatprep.subr.mxu0 0.0
    %293 = vmatpush1.msra.mxu0 0.0
    %294 = vmatprep.subr.mxu0 0.0
    %295 = vmatpush1.msra.mxu0 0.0
    %296 = vmatprep.subr.mxu0 0.0
    %297 = vmatpush1.msra.mxu0 0.0
    %298 = vmatprep.subr.mxu0 0.0
    %299 = vmatpush1.msra.mxu0 0.0
    %300 = vmatprep.subr.mxu0 0.0
    %301 = vmatpush1.msra.mxu0 0.0
    %302 = vmatprep.subr.mxu0 0.0
    %303 = vmatpush1.msra.mxu0 0.0
    %304 = vmatprep.subr.mxu0 0.0
    %305 = vmatpush1.msra.mxu0 0.0
    %306 = vmatprep.subr.mxu0 0.0
    %307 = vmatpush1.msra.mxu0 0.0
    %308 = vmatprep.subr.mxu0 0.0
    %309 = vmatpush1.msra.mxu0 0.0
    %310 = vmatprep.subr.mxu0 0.0
    %311 = vmatpush1.msra.mxu0 0.0
    %312 = vmatprep.subr.mxu0 0.0
    %313 = vmatpush1.msra.mxu0 0.0
    %314 = vmatprep.subr.mxu0 0.0
    %315 = vmatpush1.msra.mxu0 0.0
    %316 = vmatprep.subr.mxu0 0.0
    %317 = vmatpush1.msra.mxu0 0.0
    %318 = vmatprep.subr.mxu0 0.0
    %319 = vmatpush1.msra.mxu0 0.0
    %320 = vmatprep.subr.mxu0 0.0
    %321 = vmatpush1.msra.mxu0 0.0
    %322 = vmatprep.subr.mxu0 0.0
    %323 = vmatpush1.msra.mxu0 0.0
    %324 = vmatprep.subr.mxu0 0.0
    %325 = vmatpush1.msra.mxu0 0.0
    %326 = vmatprep.subr.mxu0 0.0
    %327 = vmatpush1.msra.mxu0 0.0
    %328 = vmatprep.subr.mxu0 0.0
    %329 = vmatpush1.msra.mxu0 0.0
    %330 = vmatprep.subr.mxu0 0.0
    %331 = vmatpush1.msra.mxu0 0.0
    %332 = vmatprep.subr.mxu0 0.0
    %333 = vmatpush1.msra.mxu0 0.0
    %334 = vmatprep.subr.mxu0 0.0
    %335 = vmatpush1.msra.mxu0 0.0
    %336 = vmatprep.subr.mxu0 0.0
    %337 = vmatpush1.msra.mxu0 0.0
    %338 = vmatprep.subr.mxu0 0.0
    %339 = vmatpush1.msra.mxu0 0.0
    %340 = vmatprep.mubr.f32.mxu0 0.0
    %341 = vmatmul.mubr.f32.gmra.mrb[0].mxu0 %v271
    %v342 = vpop.f32.mrb[0].mxu0
    %v343 = vadd.f32 %v268, %v342
    %v344 = vpop.f32.mrb[0].mxu0
    %345 = vmatprep.mubr.f32.mxu0 0.0
    %346 = vmatmul.mubr.f32.gmra.mrb[0].mxu0 %v274
    %v347 = vpop.f32.mrb[0].mxu0
    %v348 = vadd.f32 %v268, %v347
    %v349 = vpop.f32.mrb[0].mxu0
    %350 = vdwg.mxu0
    %351 = vmatprep.subr.mxu0 0.0
    %352 = vmatpush1.msra.mxu0 %v343
    %353 = vmatprep.subr.mxu0 0.0
    %354 = vmatpush1.msra.mxu0 %v348
    %355 = vmatprep.subr.mxu0 0.0
    %356 = vmatpush1.msra.mxu0 0.0
    %357 = vmatprep.subr.mxu0 0.0
    %358 = vmatpush1.msra.mxu0 0.0
    %359 = vmatprep.subr.mxu0 0.0
    %360 = vmatpush1.msra.mxu0 0.0
    %361 = vmatprep.subr.mxu0 0.0
    %362 = vmatpush1.msra.mxu0 0.0
    %363 = vmatprep.subr.mxu0 0.0
    %364 = vmatpush1.msra.mxu0 0.0
    %365 = vmatprep.subr.mxu0 0.0
    %366 = vmatpush1.msra.mxu0 0.0
    %367 = vmatprep.subr.mxu0 0.0
    %368 = vmatpush1.msra.mxu0 0.0
    %369 = vmatprep.subr.mxu0 0.0
    %370 = vmatpush1.msra.mxu0 0.0
    %371 = vmatprep.subr.mxu0 0.0
    %372 = vmatpush1.msra.mxu0 0.0
    %373 = vmatprep.subr.mxu0 0.0
    %374 = vmatpush1.msra.mxu0 0.0
    %375 = vmatprep.subr.mxu0 0.0
    %376 = vmatpush1.msra.mxu0 0.0
    %377 = vmatprep.subr.mxu0 0.0
    %378 = vmatpush1.msra.mxu0 0.0
    %379 = vmatprep.subr.mxu0 0.0
    %380 = vmatpush1.msra.mxu0 0.0
    %381 = vmatprep.subr.mxu0 0.0
    %382 = vmatpush1.msra.mxu0 0.0
    %383 = vmatprep.subr.mxu0 0.0
    %384 = vmatpush1.msra.mxu0 0.0
    %385 = vmatprep.subr.mxu0 0.0
    %386 = vmatpush1.msra.mxu0 0.0
    %387 = vmatprep.subr.mxu0 0.0
    %388 = vmatpush1.msra.mxu0 0.0
    %389 = vmatprep.subr.mxu0 0.0
    %390 = vmatpush1.msra.mxu0 0.0
    %391 = vmatprep.subr.mxu0 0.0
    %392 = vmatpush1.msra.mxu0 0.0
    %393 = vmatprep.subr.mxu0 0.0
    %394 = vmatpush1.msra.mxu0 0.0
    %395 = vmatprep.subr.mxu0 0.0
    %396 = vmatpush1.msra.mxu0 0.0
    %397 = vmatprep.subr.mxu0 0.0
    %398 = vmatpush1.msra.mxu0 0.0
    %399 = vmatprep.subr.mxu0 0.0
    %400 = vmatpush1.msra.mxu0 0.0
    %401 = vmatprep.subr.mxu0 0.0
    %402 = vmatpush1.msra.mxu0 0.0
    %403 = vmatprep.subr.mxu0 0.0
    %404 = vmatpush1.msra.mxu0 0.0
    %405 = vmatprep.subr.mxu0 0.0
    %406 = vmatpush1.msra.mxu0 0.0
    %407 = vmatprep.subr.mxu0 0.0
    %408 = vmatpush1.msra.mxu0 0.0
    %409 = vmatprep.subr.mxu0 0.0
    %410 = vmatpush1.msra.mxu0 0.0
    %411 = vmatprep.subr.mxu0 0.0
    %412 = vmatpush1.msra.mxu0 0.0
    %413 = vmatprep.subr.mxu0 0.0
    %414 = vmatpush1.msra.mxu0 0.0
    %415 = vmatprep.mubr.f32.mxu0 0.0
    %416 = vmatmul.mubr.f32.gmra.mrb[0].mxu0 %v177
    %v417 = vpop.f32.mrb[0].mxu0
    %v418 = vadd.f32 %v78, %v417
    %v419 = vpop.f32.mrb[0].mxu0
    %420 = vmatprep.mubr.f32.mxu0 0.0
    %421 = vmatmul.mubr.f32.gmra.mrb[0].mxu0 %v180
    %v422 = vpop.f32.mrb[0].mxu0
    %v423 = vadd.f32 %v79, %v422
    %v424 = vpop.f32.mrb[0].mxu0
    %425 = vdwg.mxu0
    %426 = vst.msk [vmem:[#allocation10] sm:$0xff] %vm93, %v418
    %427 = vst.msk [vmem:[#allocation10 + $0x8] sm:$0xff] %vm93, %v423
    // Predicated region
    $region38: #{_fused_hyperconv_impl.1} parent=1 // pred_check
      _
    $region39: #{_fused_hyperconv_impl.1} parent=1 // pred_check_branch
      %429 = sbr.rel (0) target = $region41
    $region40: #{_fused_hyperconv_impl.1} parent=1 // pred_region
      %s431 = ssub.s32 256, 256
      %432 = vsyncadd [#allocation4], %s431
      %s433 = sshll.u32 [#allocation10], 4
      %s434 = int_to_ptr.vmem [resolvable:$true] %s433
      %439 = dma.vmem_to_hbm [thread:$0]  %s434, 256, %s5, [#allocation4], 128, 128, 8
    $region41: #{_fused_hyperconv_impl.1} parent=1 // pred_fallthru
      _
    // Predicated region
    $region42: #{_fused_hyperconv_impl.1} parent=1 // pred_check
      _
    $region43: #{_fused_hyperconv_impl.1} parent=1 // pred_check_branch
      %441 = sbr.rel (0) target = $region45
    $region44: #{_fused_hyperconv_impl.1} parent=1 // pred_region
      %442 = dma.done [#allocation4], 256
    $region45: #{_fused_hyperconv_impl.1} parent=1 // pred_fallthru
      _
    %443 = vsyncpa [#allocation3], 1
    %444 = vsyncpa [#allocation6], 1
    %445 = vsyncpa [#allocation9], 1
    %446 = vsyncpa [#allocation4], 1

</llo_original>
